<compile_context>
chip_gen: v7x
topology: tpu7x:2x2x1
jax: 0.10.0
libtpu: 0.0.40
codegen_flags: <defaults>
</compile_context>

<pallas_src>
import functools

import jax
import jax.numpy as jnp
from jax.experimental import pallas as pl
from jax.experimental.pallas import tpu as pltpu


def _conv3x3_kernel(x_ref, w_ref, b_ref, o_ref, *, H, W):
    """One grid step: Nb batch elements, full H*W plane.

    x_ref : (Nb, Cin, H*W)   channels on sublanes, flattened spatial on lanes
    w_ref : (Cout, 9*Cin)    bf16 weights; K index = (dy*3+dx)*Cin + ci
    b_ref : (Cout, 1)        f32 bias
    o_ref : (Nb, Cout, H*W)  lane-dense output
    """
    Nb, Cin, HW = x_ref.shape

    w = w_ref[...]            # (Cout, 9*Cin) bf16, loaded once per step
    b = b_ref[...]            # (Cout, 1) f32

    # Border-validity masks for the zero padding, hoisted out of the 9-tap loop
    # (and shared across the Nb batch elements of this step).
    pos = jax.lax.broadcasted_iota(jnp.int32, (Cin, HW), 1)
    col = pos % W
    left_ok = col >= 1               # source column x-1 is in-bounds
    right_ok = col <= W - 2          # source column x+1 is in-bounds
    top_ok = pos >= W                # source row y-1 is in-bounds
    bot_ok = pos < (H - 1) * W       # source row y+1 is in-bounds

    def _tap_mask(oy, ox):
        m = None
        if ox == -1:
            m = left_ok
        elif ox == 1:
            m = right_ok
        if oy == -1:
            m = top_ok if m is None else jnp.logical_and(m, top_ok)
        elif oy == 1:
            m = bot_ok if m is None else jnp.logical_and(m, bot_ok)
        return m

    masks = [[_tap_mask(dy - 1, dx - 1) for dx in range(3)] for dy in range(3)]
    zero = jnp.zeros((), jnp.bfloat16)

    for nb in range(Nb):             # Nb is a small compile-time constant
        x = x_ref[nb].astype(jnp.bfloat16)       # (Cin, HW) bf16 MXU operand
        taps = []
        for dy in range(3):
            for dx in range(3):
                oy, ox = dy - 1, dx - 1
                off = oy * W + ox    # flattened source offset of this tap
                if off == 0:
                    shifted = x
                else:
                    # shifted[p] == x[(p + off) mod HW]; the wrapped-around
                    # elements are exactly the out-of-bounds source pixels
                    # zeroed by the border masks below (padding=1, stride=1).
                    shifted = jnp.roll(x, shift=(-off) % HW, axis=1)
                m = masks[dy][dx]
                if m is not None:
                    shifted = jnp.where(m, shifted, zero)
                taps.append(shifted)

        # Patch stays in registers; single MXU contraction over K = 9*Cin.
        patch = jnp.concatenate(taps, axis=0)     # (9*Cin, HW) bf16
        acc = jnp.dot(w, patch, preferred_element_type=jnp.float32)
        acc = acc + b                              # (Cout, HW) f32
        o_ref[nb] = acc.astype(o_ref.dtype)


def conv_processor_forward(x, weight, bias, *, batch_per_step=None):
    """Equivalent of ConvProcessor.forward (Conv2d k=3, stride=1, padding=1).

    x      : (N, Cin, H, W)    NCHW input (PyTorch layout)
    weight : (Cout, Cin, 3, 3) OIHW conv weight (PyTorch layout)
    bias   : (Cout,)
    returns: (N, Cout, H, W)
    """
    N, Cin, H, W = x.shape
    Cout = weight.shape[0]
    HW = H * W

    if batch_per_step is None:
        # Amortize per-grid-step overhead, but keep >= 2 grid steps so both
        # v7x TensorCores get work (no-op on v5e/v6e's single TC).
        batch_per_step = max(1, N // 2)
        if N % batch_per_step:
            batch_per_step = 1
    Nb = batch_per_step
    assert N % Nb == 0, "batch_per_step must divide N"

    # Free relayouts only: contiguous reshape of x, tiny 288-float weight shuffle.
    x_flat = x.reshape(N, Cin, HW)
    # OIHW -> (Cout, ky, kx, Cin) -> (Cout, 9*Cin); K index = (dy*3+dx)*Cin + ci.
    w2d = jnp.transpose(weight, (0, 2, 3, 1)).reshape(Cout, 9 * Cin)
    w2d = w2d.astype(jnp.bfloat16)            # bf16 MXU operand, f32 accumulate
    b2d = bias.reshape(Cout, 1).astype(jnp.float32)

    kernel = functools.partial(_conv3x3_kernel, H=H, W=W)

    out_flat = pl.pallas_call(
        kernel,
        out_shape=jax.ShapeDtypeStruct((N, Cout, HW), x.dtype),
        grid_spec=pltpu.PrefetchScalarGridSpec(
            num_scalar_prefetch=0,
            grid=(N // Nb,),
            in_specs=[
                pl.BlockSpec((Nb, Cin, HW), lambda b: (b, 0, 0)),
                pl.BlockSpec((Cout, 9 * Cin), lambda b: (0, 0)),
                pl.BlockSpec((Cout, 1), lambda b: (0, 0)),
            ],
            out_specs=pl.BlockSpec((Nb, Cout, HW), lambda b: (b, 0, 0)),
        ),
        compiler_params=pltpu.CompilerParams(
            dimension_semantics=("parallel",)),
    )(x_flat, w2d, b2d)

    return out_flat.reshape(N, Cout, H, W)


if __name__ == "__main__":
    key = jax.random.PRNGKey(0)
    kx, kw, kb = jax.random.split(key, 3)

    N, Cin, H, W = 2, 4, 16, 16
    Cout = 8

    x = jax.random.normal(kx, (N, Cin, H, W), dtype=jnp.float32)

    # Deterministic synthetic Conv2d parameters (PyTorch OIHW layout).
    fan_in = Cin * 3 * 3
    bound = 1.0 / (fan_in ** 0.5)
    weight = jax.random.uniform(kw, (Cout, Cin, 3, 3),
                                minval=-bound, maxval=bound, dtype=jnp.float32)
    bias = jax.random.uniform(kb, (Cout,),
                              minval=-bound, maxval=bound, dtype=jnp.float32)

    out = conv_processor_forward(x, weight, bias)
    out = jax.block_until_ready(out)

    # Reference check with XLA's conv (NCHW/OIHW, same semantics as PyTorch).
    ref = jax.lax.conv_general_dilated(
        x, weight, window_strides=(1, 1), padding=((1, 1), (1, 1)),
        dimension_numbers=("NCHW", "OIHW", "NCHW")) + bias.reshape(1, -1, 1, 1)

    assert out.shape == (N, Cout, H, W)
    # bf16 MXU operands with f32 accumulation: ~1e-2 relative error expected.
    assert jnp.allclose(out, ref, rtol=2e-2, atol=2e-2), "mismatch vs reference conv"

    print("KERNEL_OK")
</pallas_src>

<mosaic_0001>
module attributes {stable_mosaic.version = 11 : i64} {
  func.func @_conv3x3_kernel(%arg0: i32, %arg1: memref<1x4x256xf32, #tpu.memory_space<vmem>>, %arg2: memref<8x36xbf16, #tpu.memory_space<vmem>>, %arg3: memref<8x1xf32, #tpu.memory_space<vmem>>, %arg4: memref<1x8x256xf32, #tpu.memory_space<vmem>>) attributes {dimension_semantics = [#tpu.dimension_semantics<parallel>], iteration_bounds = array<i64: 2>, scalar_prefetch = 0 : i64, scratch_operands = 0 : i64, tpu.core_type = #tpu.core_type<tc>, window_params = [{transform_indices = @transform_0, window_bounds = array<i64: 1, 4, 256>}, {pipeline_mode = #tpu.pipeline_mode<synchronous>, transform_indices = @transform_1, window_bounds = array<i64: 8, 36>}, {pipeline_mode = #tpu.pipeline_mode<synchronous>, transform_indices = @transform_2, window_bounds = array<i64: 8, 1>}, {transform_indices = @transform_3, window_bounds = array<i64: 1, 8, 256>}]} {
    %c0 = arith.constant 0 : index
    %c0_0 = arith.constant 0 : index
    %0 = vector.load %arg2[%c0, %c0_0] : memref<8x36xbf16, #tpu.memory_space<vmem>>, vector<8x36xbf16>
    %c0_1 = arith.constant 0 : index
    %c0_2 = arith.constant 0 : index
    %1 = vector.load %arg3[%c0_1, %c0_2] : memref<8x1xf32, #tpu.memory_space<vmem>>, vector<8x1xf32>
    %2 = tpu.iota {dimensions = array<i32: 1>} : vector<4x256xi32>
    %c16_i32 = arith.constant 16 : i32
    %c0_i32 = arith.constant 0 : i32
    %3 = arith.cmpi eq, %c16_i32, %c0_i32 : i32
    %c1_i32 = arith.constant 1 : i32
    %4 = arith.select %3, %c1_i32, %c16_i32 : i32
    %5 = vector.broadcast %4 : i32 to vector<4x256xi32>
    %6 = arith.remsi %2, %5 : vector<4x256xi32>
    %c0_i32_3 = arith.constant 0 : i32
    %7 = vector.broadcast %c0_i32_3 : i32 to vector<4x256xi32>
    %8 = arith.cmpi ne, %6, %7 : vector<4x256xi32>
    %c0_i32_4 = arith.constant 0 : i32
    %9 = vector.broadcast %c0_i32_4 : i32 to vector<4x256xi32>
    %10 = arith.cmpi slt, %6, %9 : vector<4x256xi32>
    %c0_i32_5 = arith.constant 0 : i32
    %11 = arith.cmpi slt, %4, %c0_i32_5 : i32
    %12 = vector.broadcast %11 : i1 to vector<4x256xi1>
    %13 = vector.broadcast %12 : vector<4x256xi1> to vector<4x256xi1>
    %14 = arith.xori %10, %13 : vector<4x256xi1>
    %15 = arith.andi %14, %8 : vector<4x256xi1>
    %16 = vector.broadcast %4 : i32 to vector<4x256xi32>
    %17 = arith.addi %6, %16 : vector<4x256xi32>
    %18 = arith.select %15, %17, %6 : vector<4x256xi1>, vector<4x256xi32>
    %c1_i32_6 = arith.constant 1 : i32
    %19 = vector.broadcast %c1_i32_6 : i32 to vector<4x256xi32>
    %20 = arith.cmpi sge, %18, %19 : vector<4x256xi32>
    %c14_i32 = arith.constant 14 : i32
    %21 = vector.broadcast %c14_i32 : i32 to vector<4x256xi32>
    %22 = arith.cmpi sle, %18, %21 : vector<4x256xi32>
    %c16_i32_7 = arith.constant 16 : i32
    %23 = vector.broadcast %c16_i32_7 : i32 to vector<4x256xi32>
    %24 = arith.cmpi sge, %2, %23 : vector<4x256xi32>
    %c240_i32 = arith.constant 240 : i32
    %25 = vector.broadcast %c240_i32 : i32 to vector<4x256xi32>
    %26 = arith.cmpi slt, %2, %25 : vector<4x256xi32>
    %27 = arith.andi %20, %24 : vector<4x256xi1>
    %28 = arith.andi %22, %24 : vector<4x256xi1>
    %29 = arith.andi %20, %26 : vector<4x256xi1>
    %30 = arith.andi %22, %26 : vector<4x256xi1>
    %c0_8 = arith.constant 0 : index
    %c0_9 = arith.constant 0 : index
    %c0_10 = arith.constant 0 : index
    %31 = vector.load %arg1[%c0_8, %c0_9, %c0_10] : memref<1x4x256xf32, #tpu.memory_space<vmem>>, vector<1x4x256xf32>
    %32 = vector.shape_cast %31 : vector<1x4x256xf32> to vector<4x256xf32>
    %33 = arith.truncf %32 : vector<4x256xf32> to vector<4x256xbf16>
    %34 = vector.extract_strided_slice %33 {offsets = [0, 239], sizes = [4, 17], strides = [1, 1]} : vector<4x256xbf16> to vector<4x17xbf16>
    %35 = vector.extract_strided_slice %33 {offsets = [0, 0], sizes = [4, 239], strides = [1, 1]} : vector<4x256xbf16> to vector<4x239xbf16>
    %36 = tpu.concatenate %34, %35 in 1 : vector<4x17xbf16>, vector<4x239xbf16> -> vector<4x256xbf16>
    %cst = arith.constant 0.000000e+00 : bf16
    %37 = vector.broadcast %cst : bf16 to vector<4x256xbf16>
    %38 = arith.select %27, %36, %37 : vector<4x256xi1>, vector<4x256xbf16>
    %39 = vector.extract_strided_slice %33 {offsets = [0, 240], sizes = [4, 16], strides = [1, 1]} : vector<4x256xbf16> to vector<4x16xbf16>
    %40 = vector.extract_strided_slice %33 {offsets = [0, 0], sizes = [4, 240], strides = [1, 1]} : vector<4x256xbf16> to vector<4x240xbf16>
    %41 = tpu.concatenate %39, %40 in 1 : vector<4x16xbf16>, vector<4x240xbf16> -> vector<4x256xbf16>
    %cst_11 = arith.constant 0.000000e+00 : bf16
    %42 = vector.broadcast %cst_11 : bf16 to vector<4x256xbf16>
    %43 = arith.select %24, %41, %42 : vector<4x256xi1>, vector<4x256xbf16>
    %44 = vector.extract_strided_slice %33 {offsets = [0, 241], sizes = [4, 15], strides = [1, 1]} : vector<4x256xbf16> to vector<4x15xbf16>
    %45 = vector.extract_strided_slice %33 {offsets = [0, 0], sizes = [4, 241], strides = [1, 1]} : vector<4x256xbf16> to vector<4x241xbf16>
    %46 = tpu.concatenate %44, %45 in 1 : vector<4x15xbf16>, vector<4x241xbf16> -> vector<4x256xbf16>
    %cst_12 = arith.constant 0.000000e+00 : bf16
    %47 = vector.broadcast %cst_12 : bf16 to vector<4x256xbf16>
    %48 = arith.select %28, %46, %47 : vector<4x256xi1>, vector<4x256xbf16>
    %49 = vector.extract_strided_slice %33 {offsets = [0, 255], sizes = [4, 1], strides = [1, 1]} : vector<4x256xbf16> to vector<4x1xbf16>
    %50 = vector.extract_strided_slice %33 {offsets = [0, 0], sizes = [4, 255], strides = [1, 1]} : vector<4x256xbf16> to vector<4x255xbf16>
    %51 = tpu.concatenate %49, %50 in 1 : vector<4x1xbf16>, vector<4x255xbf16> -> vector<4x256xbf16>
    %cst_13 = arith.constant 0.000000e+00 : bf16
    %52 = vector.broadcast %cst_13 : bf16 to vector<4x256xbf16>
    %53 = arith.select %20, %51, %52 : vector<4x256xi1>, vector<4x256xbf16>
    %54 = vector.extract_strided_slice %33 {offsets = [0, 1], sizes = [4, 255], strides = [1, 1]} : vector<4x256xbf16> to vector<4x255xbf16>
    %55 = vector.extract_strided_slice %33 {offsets = [0, 0], sizes = [4, 1], strides = [1, 1]} : vector<4x256xbf16> to vector<4x1xbf16>
    %56 = tpu.concatenate %54, %55 in 1 : vector<4x255xbf16>, vector<4x1xbf16> -> vector<4x256xbf16>
    %cst_14 = arith.constant 0.000000e+00 : bf16
    %57 = vector.broadcast %cst_14 : bf16 to vector<4x256xbf16>
    %58 = arith.select %22, %56, %57 : vector<4x256xi1>, vector<4x256xbf16>
    %59 = vector.extract_strided_slice %33 {offsets = [0, 15], sizes = [4, 241], strides = [1, 1]} : vector<4x256xbf16> to vector<4x241xbf16>
    %60 = vector.extract_strided_slice %33 {offsets = [0, 0], sizes = [4, 15], strides = [1, 1]} : vector<4x256xbf16> to vector<4x15xbf16>
    %61 = tpu.concatenate %59, %60 in 1 : vector<4x241xbf16>, vector<4x15xbf16> -> vector<4x256xbf16>
    %cst_15 = arith.constant 0.000000e+00 : bf16
    %62 = vector.broadcast %cst_15 : bf16 to vector<4x256xbf16>
    %63 = arith.select %29, %61, %62 : vector<4x256xi1>, vector<4x256xbf16>
    %64 = vector.extract_strided_slice %33 {offsets = [0, 16], sizes = [4, 240], strides = [1, 1]} : vector<4x256xbf16> to vector<4x240xbf16>
    %65 = vector.extract_strided_slice %33 {offsets = [0, 0], sizes = [4, 16], strides = [1, 1]} : vector<4x256xbf16> to vector<4x16xbf16>
    %66 = tpu.concatenate %64, %65 in 1 : vector<4x240xbf16>, vector<4x16xbf16> -> vector<4x256xbf16>
    %cst_16 = arith.constant 0.000000e+00 : bf16
    %67 = vector.broadcast %cst_16 : bf16 to vector<4x256xbf16>
    %68 = arith.select %26, %66, %67 : vector<4x256xi1>, vector<4x256xbf16>
    %69 = vector.extract_strided_slice %33 {offsets = [0, 17], sizes = [4, 239], strides = [1, 1]} : vector<4x256xbf16> to vector<4x239xbf16>
    %70 = vector.extract_strided_slice %33 {offsets = [0, 0], sizes = [4, 17], strides = [1, 1]} : vector<4x256xbf16> to vector<4x17xbf16>
    %71 = tpu.concatenate %69, %70 in 1 : vector<4x239xbf16>, vector<4x17xbf16> -> vector<4x256xbf16>
    %cst_17 = arith.constant 0.000000e+00 : bf16
    %72 = vector.broadcast %cst_17 : bf16 to vector<4x256xbf16>
    %73 = arith.select %30, %71, %72 : vector<4x256xi1>, vector<4x256xbf16>
    %74 = tpu.concatenate %38, %43, %48, %53, %33, %58, %63, %68, %73 in 0 : vector<4x256xbf16>, vector<4x256xbf16>, vector<4x256xbf16>, vector<4x256xbf16>, vector<4x256xbf16>, vector<4x256xbf16>, vector<4x256xbf16>, vector<4x256xbf16>, vector<4x256xbf16> -> vector<36x256xbf16>
    %cst_18 = arith.constant dense<0.000000e+00> : vector<8x256xf32>
    %75 = tpu.matmul %0, %74, %cst_18 {dimension_numbers = #tpu.dot_dimension_numbers<[1], [0], [0], [1], [0, 0, 1, 1], [], []>} : vector<8x36xbf16>, vector<36x256xbf16>, vector<8x256xf32> -> vector<8x256xf32>
    %76 = vector.broadcast %1 : vector<8x1xf32> to vector<8x256xf32>
    %77 = arith.addf %75, %76 : vector<8x256xf32>
    %c0_19 = arith.constant 0 : index
    %c0_20 = arith.constant 0 : index
    %c0_21 = arith.constant 0 : index
    %78 = vector.load %arg4[%c0_19, %c0_20, %c0_21] : memref<1x8x256xf32, #tpu.memory_space<vmem>>, vector<1x8x256xf32>
    %79 = vector.shape_cast %78 : vector<1x8x256xf32> to vector<8x256xf32>
    %80 = vector.shape_cast %77 : vector<8x256xf32> to vector<1x8x256xf32>
    tpu.vector_store %arg4[%c0_19, %c0_20, %c0_21], %80 {strides = array<i32>} : memref<1x8x256xf32, #tpu.memory_space<vmem>>, vector<1x8x256xf32>,
    return
  }
  func.func @transform_0(%arg0: i32) -> (i32, i32, i32) {
    %c0_i32 = arith.constant 0 : i32
    %c0_i32_0 = arith.constant 0 : i32
    %c0_i32_1 = arith.constant 0 : i32
    return %arg0, %c0_i32, %c0_i32_0 : i32, i32, i32
  }
  func.func @transform_1(%arg0: i32) -> (i32, i32) {
    %c0_i32 = arith.constant 0 : i32
    %c0_i32_0 = arith.constant 0 : i32
    %c0_i32_1 = arith.constant 0 : i32
    return %c0_i32, %c0_i32_0 : i32, i32
  }
  func.func @transform_2(%arg0: i32) -> (i32, i32) {
    %c0_i32 = arith.constant 0 : i32
    %c0_i32_0 = arith.constant 0 : i32
    %c0_i32_1 = arith.constant 0 : i32
    return %c0_i32, %c0_i32_0 : i32, i32
  }
  func.func @transform_3(%arg0: i32) -> (i32, i32, i32) {
    %c0_i32 = arith.constant 0 : i32
    %c0_i32_0 = arith.constant 0 : i32
    %c0_i32_1 = arith.constant 0 : i32
    return %arg0, %c0_i32, %c0_i32_0 : i32, i32, i32
  }
}

</mosaic_0001>

<llo_original>
// kernel: tpu_custom_call.1
$region0: #{tpu_custom_call.1}
  #allocation0 [shape = 'u32[]', space=smem, size = 0x4, offset = 0x4, fixed_abs, tag = 'smem constant byte address 0x4 - core index']
  #allocation1 [shape = 'u32[144,128]{1,0:T(1,128)}', space=vmem, size = 0x12000, scoped, tag = 'internal scratch']
  %s0 = inlined_call_operand.hbm [shape: f32[2,4,256], index: 0, kind: input, shape index: {}]
  %s1 = inlined_call_operand.vmem [shape: bf16[8,36], index: 1, kind: input, shape index: {}]
  %s2 = inlined_call_operand.vmem [shape: f32[8,1], index: 2, kind: input, shape index: {}]
  %s3 = inlined_call_operand.hbm [shape: f32[2,8,256], index: 3, kind: output, shape index: {}]
  %s4 = sld [smem:[#allocation0]]
  $region49: #{tpu_custom_call.1} parent=0
    _
  %s6 = ssub.s32 1, %s4
  %s7 = scalar_select 0, %s6, %s4
  $region1: #{tpu_custom_call.1} parent=0
    #allocation2 [shape = 'u8[8192]{0}', space=vmem, size = 0x2000, scoped, tag = 'input window, operand 0']
    #allocation3 [shape = 's32[2]{0}', space=sflag, size = 0x8, scoped, tag = 'scoped memory for tpu_custom_call.1']
    #allocation4 [shape = 's32[2]{0}', space=sflag, size = 0x8, scoped, tag = 'scoped memory for tpu_custom_call.1']
    #allocation5 [shape = 'u8[16384]{0}', space=vmem, size = 0x4000, scoped, tag = 'output window, operand 0']
    %8 = vsyncpa [#allocation3], 0
    %s9 = scalar_lea.sflag [#allocation3], 1
    %10 = vsyncpa %s9, 0
    %11 = vsyncpa [#allocation4], 0
    %s12 = scalar_lea.sflag [#allocation4], 1
    %13 = vsyncpa %s12, 0
    loop: start=0, step=1, limit=4
    $region2: #{tpu_custom_call.1} parent=1 // loop_pre_header
      _
    $region3: #{tpu_custom_call.1} parent=1 // loop_header
      %s15 = sphi 0, %s19
      %p16 = scmp.ge.s32.totalorder %s15, 4
      %s25 = sphi 0, %s27
      %s28 = sphi 0, %s25
      %s29 = sphi 0, %s28
      %s45 = sphi 0, %s29
      %s49 = sphi 0, %s49
      %s51 = sphi 0, %s49
      %s52 = sphi 0, %s51
      %s66 = sphi 0, %s52
      %s70 = sphi 0, %s70
      %s72 = sphi 0, %s70
      %s73 = sphi 0, %s72
      %s87 = sphi 0, %s73
      %s93 = sphi 0, %s95
      %s96 = sphi 0, %s93
      %s97 = sphi 0, %s96
      %s113 = sphi 0, %s97
    $region4: #{tpu_custom_call.1} parent=1 // loop_header_branch
      %18 = sbr.rel (%p16) target = $region8
    $region5: #{tpu_custom_call.1} parent=1 // loop_body
      %s20 = ssub.s32 %s15, 1
      %s21 = ssub.s32 %s15, 2
      %s22 = sadd.s32 %s15, 1
      %s23 = ssub.s32 %s15, %s22
      %p24 = scmp.eq.s32.totalorder %s23, 0
      %s26 = sadd.s32 %s25, 1
      %s27 = scalar_select %p24, %s25, %s26
      %p30 = pneg %p24
      %p31 = scmp.eq.s32.totalorder %s15, 1
      %p32 = por %p30, %p31
      %p33 = scmp.ne.s32.totalorder %s25, %s28
      %p34 = scmp.eq.s32.totalorder %s15, 0
      %p35 = por %p33, %p34
      %p36 = scmp.ne.s32.totalorder %s25, %s28
      %p37 = scmp.eq.s32.totalorder %s20, 1
      %p38 = por %p36, %p37
      %p39 = scmp.ne.s32.totalorder %s28, %s29
      %p40 = scmp.eq.s32.totalorder %s20, 0
      %p41 = por %p39, %p40
      %p42 = scmp.ne.s32.totalorder %s28, %s29
      %p43 = scmp.eq.s32.totalorder %s21, 1
      %p44 = por %p42, %p43
      %p46 = scmp.ne.s32.totalorder %s29, %s45
      %p47 = scmp.eq.s32.totalorder %s21, 0
      %p48 = por %p46, %p47
      %s50 = sadd.s32 %s49, 1
      %p53 = scmp.eq.s32.totalorder %s15, 1
      %p54 = scmp.ne.s32.totalorder %s49, %s51
      %p55 = scmp.eq.s32.totalorder %s15, 0
      %p56 = por %p54, %p55
      %p57 = scmp.ne.s32.totalorder %s49, %s51
      %p58 = scmp.eq.s32.totalorder %s20, 1
      %p59 = por %p57, %p58
      %p60 = scmp.ne.s32.totalorder %s51, %s52
      %p61 = scmp.eq.s32.totalorder %s20, 0
      %p62 = por %p60, %p61
      %p63 = scmp.ne.s32.totalorder %s51, %s52
      %p64 = scmp.eq.s32.totalorder %s21, 1
      %p65 = por %p63, %p64
      %p67 = scmp.ne.s32.totalorder %s52, %s66
      %p68 = scmp.eq.s32.totalorder %s21, 0
      %p69 = por %p67, %p68
      %s71 = sadd.s32 %s70, 1
      %p74 = scmp.eq.s32.totalorder %s15, 1
      %p75 = scmp.ne.s32.totalorder %s70, %s72
      %p76 = scmp.eq.s32.totalorder %s15, 0
      %p77 = por %p75, %p76
      %p78 = scmp.ne.s32.totalorder %s70, %s72
      %p79 = scmp.eq.s32.totalorder %s20, 1
      %p80 = por %p78, %p79
      %p81 = scmp.ne.s32.totalorder %s72, %s73
      %p82 = scmp.eq.s32.totalorder %s20, 0
      %p83 = por %p81, %p82
      %p84 = scmp.ne.s32.totalorder %s72, %s73
      %p85 = scmp.eq.s32.totalorder %s21, 1
      %p86 = por %p84, %p85
      %p88 = scmp.ne.s32.totalorder %s73, %s87
      %p89 = scmp.eq.s32.totalorder %s21, 0
      %p90 = por %p88, %p89
      %s91 = ssub.s32 %s15, %s22
      %p92 = scmp.eq.s32.totalorder %s91, 0
      %s94 = sadd.s32 %s93, 1
      %s95 = scalar_select %p92, %s93, %s94
      %p98 = pneg %p92
      %p99 = scmp.eq.s32.totalorder %s15, 1
      %p100 = por %p98, %p99
      %p101 = scmp.ne.s32.totalorder %s93, %s96
      %p102 = scmp.eq.s32.totalorder %s15, 0
      %p103 = por %p101, %p102
      %p104 = scmp.ne.s32.totalorder %s93, %s96
      %p105 = scmp.eq.s32.totalorder %s20, 1
      %p106 = por %p104, %p105
      %p107 = scmp.ne.s32.totalorder %s96, %s97
      %p108 = scmp.eq.s32.totalorder %s20, 0
      %p109 = por %p107, %p108
      %p110 = scmp.ne.s32.totalorder %s96, %s97
      %p111 = scmp.eq.s32.totalorder %s21, 1
      %p112 = por %p110, %p111
      %p114 = scmp.ne.s32.totalorder %s97, %s113
      %p115 = scmp.eq.s32.totalorder %s21, 0
      %p116 = por %p114, %p115
      %p117 = scmp.le.s32.totalorder 1, %s15
      %p118 = scmp.lt.s32.totalorder %s15, 3
      %p119 = pnand %p117, %p118
      %p120 = pneg %p119
      // Predicated region
      $region9: #{tpu_custom_call.1} parent=5 // pred_check
        _
      $region10: #{tpu_custom_call.1} parent=5 // pred_check_branch
        %122 = sbr.rel (%p119) target = $region12
      $region11: #{tpu_custom_call.1} parent=5 // pred_region
        %s123 = ssub.s32 %s15, 1
        // Predicated region
        $region13: #{tpu_custom_call.1} parent=11 // pred_check
          %p124 = pneg %p62
        $region14: #{tpu_custom_call.1} parent=11 // pred_check_branch
          %126 = sbr.rel (%p124) target = $region16
        $region15: #{tpu_custom_call.1} parent=11 // pred_region
          _
        $region16: #{tpu_custom_call.1} parent=11 // pred_fallthru
          _
        // Predicated region
        $region17: #{tpu_custom_call.1} parent=11 // pred_check
          %p127 = pneg %p83
        $region18: #{tpu_custom_call.1} parent=11 // pred_check_branch
          %129 = sbr.rel (%p127) target = $region20
        $region19: #{tpu_custom_call.1} parent=11 // pred_region
          _
        $region20: #{tpu_custom_call.1} parent=11 // pred_fallthru
          _
      $region12: #{tpu_custom_call.1} parent=5 // pred_fallthru
        _
      %p130 = scmp.lt.s32.totalorder %s15, 2
      // Predicated region
      $region21: #{tpu_custom_call.1} parent=5 // pred_check
        %p131 = pneg %p130
      $region22: #{tpu_custom_call.1} parent=5 // pred_check_branch
        %133 = sbr.rel (%p131) target = $region24
      $region23: #{tpu_custom_call.1} parent=5 // pred_region
        // Predicated region
        $region25: #{tpu_custom_call.1} parent=23 // pred_check
          %p134 = pneg %p35
        $region26: #{tpu_custom_call.1} parent=23 // pred_check_branch
          %136 = sbr.rel (%p134) target = $region28
        $region27: #{tpu_custom_call.1} parent=23 // pred_region
          %s137 = sand.u32 %s25, 1
          %s138 = scalar_lea.sflag [#allocation3], %s137
          %s139 = sand.u32 %s25, 1
          %s140 = smul.addr %s139, 8
          %s141 = scalar_lea.vmem [#allocation2], %s140
          %s143 = ssub.s32 128, 128
          %144 = vsyncadd %s138, %s143
          %s145 = smul.addr %s15, 2
          %s146 = smul.addr %s145, 64
          %s147 = scalar_lea.hbm %s0, %s146
          %s149 = sshll.u32 %s141, 4
          %s150 = int_to_ptr.vmem [resolvable:$true] %s149
          %152 = dma.hbm_to_vmem [thread:$0]  %s147, 128, %s150, %s138
        $region28: #{tpu_custom_call.1} parent=23 // pred_fallthru
          _
      $region24: #{tpu_custom_call.1} parent=5 // pred_fallthru
        _
      %p153 = scmp.le.s32.totalorder 1, %s15
      %p154 = scmp.lt.s32.totalorder %s15, 3
      %p155 = pnand %p153, %p154
      %p156 = pneg %p155
      // Predicated region
      $region29: #{tpu_custom_call.1} parent=5 // pred_check
        _
      $region30: #{tpu_custom_call.1} parent=5 // pred_check_branch
        %158 = sbr.rel (%p155) target = $region32
      $region31: #{tpu_custom_call.1} parent=5 // pred_region
        %s159 = ssub.s32 %s15, 1
        %s160 = sand.u32 %s28, 1
        %s161 = scalar_lea.sflag [#allocation3], %s160
        %s162 = sand.u32 %s28, 1
        %s163 = smul.addr %s162, 8
        %s164 = scalar_lea.vmem [#allocation2], %s163
        // Predicated region
        $region33: #{tpu_custom_call.1} parent=31 // pred_check
          %p165 = pneg %p41
        $region34: #{tpu_custom_call.1} parent=31 // pred_check_branch
          %167 = sbr.rel (%p165) target = $region36
        $region35: #{tpu_custom_call.1} parent=31 // pred_region
          %168 = dma.done %s161, 128
        $region36: #{tpu_custom_call.1} parent=31 // pred_fallthru
          _
        %s169 = sand.u32 %s28, 1
        %s170 = scalar_lea.sflag [#allocation3], %s169
        %s171 = sand.u32 %s28, 1
        %s172 = smul.addr %s171, 8
        %s173 = scalar_lea.vmem [#allocation2], %s172
        %p174 = pneg %p41
        %p175 = pneg %p38
        %p176 = pneg %p62
        %p177 = pneg %p59
        %p178 = pneg %p83
        %p179 = pneg %p80
        %p180 = pneg %p109
        %p181 = pneg %p106
        %s182 = sand.u32 %s96, 1
        %s183 = scalar_lea.sflag [#allocation4], %s182
        %s184 = sand.u32 %s96, 1
        %s185 = smul.addr %s184, 16
        %s186 = scalar_lea.vmem [#allocation5], %s185
        %v190 = vld [vmem:[%s1] sm:$0xf]
        %v191 = vld [vmem:[%s2] sm:$0xff]
        %v192 = vlaneseq
        %v193 = vand.u32 %v192, 127
        %v194 = vadd.s32 %v193, 128
        %vm195 = vcmp.lt.s32.totalorder %v193, 0
        %v196 = vsub.s32 0, %v193
        %v197 = vsel %vm195, %v196, %v193
        %v198 = vshrl.u32 %v197, 4
        %v199 = vand.u32 %v197, 15
        %v200 = vsub.s32 0, %v199
        %v201 = vsel %vm195, %v200, %v199
        %vm202 = vcmp.lt.s32.totalorder %v194, 0
        %v203 = vsub.s32 0, %v194
        %v204 = vsel %vm202, %v203, %v194
        %v205 = vshrl.u32 %v204, 4
        %v206 = vand.u32 %v204, 15
        %v207 = vsub.s32 0, %v206
        %v208 = vsel %vm202, %v207, %v206
        %vm209 = vcmp.ne.s32.totalorder %v201, 0
        %vm210 = vcmp.ne.s32.totalorder %v208, 0
        %vm211 = vcmp.lt.s32.totalorder %v201, 0
        %vm212 = vcmp.lt.s32.totalorder %v208, 0
        %vm213 = vmand %vm211, %vm209
        %vm214 = vmand %vm212, %vm210
        %v215 = vadd.s32 %v201, 16
        %v216 = vadd.s32 %v208, 16
        %v217 = vsel %vm213, %v215, %v201
        %v218 = vsel %vm214, %v216, %v208
        %vm219 = vcmp.ge.s32.totalorder %v217, 1
        %vm220 = vcmp.ge.s32.totalorder %v218, 1
        %vm221 = vcmp.le.s32.totalorder %v217, 14
        %vm222 = vcmp.le.s32.totalorder %v218, 14
        %vm223 = vcmp.ge.s32.totalorder %v193, 16
        %vm224 = vcmp.ge.s32.totalorder %v194, 16
        %vm225 = vcmp.lt.s32.totalorder %v193, 240
        %vm226 = vcmp.lt.s32.totalorder %v194, 240
        %vm227 = vmand %vm219, %vm223
        %vm228 = vmand %vm220, %vm224
        %vm229 = vmand %vm221, %vm223
        %vm230 = vmand %vm222, %vm224
        %vm231 = vmand %vm219, %vm225
        %vm232 = vmand %vm220, %vm226
        %vm233 = vmand %vm221, %vm225
        %vm234 = vmand %vm222, %vm226
        %v235 = vld [vmem:[%s164] sm:$0xff]
        %v237 = vcombine.high %v235, %v235
        %v239 = vpack.c.bf16 %v235, %v235
        %v240 = vpack.c.bf16 %v237, %v237
        %242 = vrot.lane.b32.xlu0 %v240, 17
        %v243 = vpop.permute.xlu0 %242
        %245 = vrot.lane.b32.xlu0 %v239, 17
        %v246 = vpop.permute.xlu0 %245
        %vm247 = vcmask 138240
        %v248 = vsel %vm247, %v246, %v243
        %vm250 = vcmask 138240
        %v253 = vsel %vm250, %v243, %v246
        %vm255 = vmpackc.low %vm228, %vm227
        %v256 = vsel %vm255, 65537, 0
        %v257 = vlaneseq
        %v258 = vshrl.u32 %v257, 7
        %v259 = vsub.s32 0, %v258
        %v260 = vrot.slane %v256, %v259
        %v261 = vlaneseq
        %v262 = vshrl.u32 %v261, 7
        %v263 = vsub.s32 4, %v262
        %v264 = vrot.slane %v256, %v263
        %vm265 = vcmp.ne.s16.totalorder %v260, 0
        %vm266 = vcmp.ne.s16.totalorder %v264, 0
        %v267 = vsel %vm265, %v253, 0
        %v268 = vsel %vm266, %v248, 0
        %269 = vrot.lane.b32.xlu0 %v240, 16
        %v270 = vpop.permute.xlu0 %269
        %271 = vrot.lane.b32.xlu0 %v239, 16
        %v272 = vpop.permute.xlu0 %271
        %vm273 = vcmask 130048
        %v274 = vsel %vm273, %v272, %v270
        %vm276 = vcmask 130048
        %v279 = vsel %vm276, %v270, %v272
        %vm281 = vmpackc.low %vm224, %vm223
        %v282 = vsel %vm281, 65537, 0
        %v283 = vlaneseq
        %v284 = vshrl.u32 %v283, 7
        %v285 = vsub.s32 0, %v284
        %v286 = vrot.slane %v282, %v285
        %v287 = vlaneseq
        %v288 = vshrl.u32 %v287, 7
        %v289 = vsub.s32 4, %v288
        %v290 = vrot.slane %v282, %v289
        %vm291 = vcmp.ne.s16.totalorder %v286, 0
        %vm292 = vcmp.ne.s16.totalorder %v290, 0
        %v293 = vsel %vm291, %v279, 0
        %v294 = vsel %vm292, %v274, 0
        %295 = vrot.lane.b32.xlu0 %v240, 15
        %v296 = vpop.permute.xlu0 %295
        %297 = vrot.lane.b32.xlu0 %v239, 15
        %v298 = vpop.permute.xlu0 %297
        %vm299 = vcmask 121856
        %v300 = vsel %vm299, %v298, %v296
        %vm302 = vcmask 121856
        %v305 = vsel %vm302, %v296, %v298
        %vm307 = vmpackc.low %vm230, %vm229
        %v308 = vsel %vm307, 65537, 0
        %v309 = vlaneseq
        %v310 = vshrl.u32 %v309, 7
        %v311 = vsub.s32 0, %v310
        %v312 = vrot.slane %v308, %v311
        %v313 = vlaneseq
        %v314 = vshrl.u32 %v313, 7
        %v315 = vsub.s32 4, %v314
        %v316 = vrot.slane %v308, %v315
        %vm317 = vcmp.ne.s16.totalorder %v312, 0
        %vm318 = vcmp.ne.s16.totalorder %v316, 0
        %v319 = vsel %vm317, %v305, 0
        %v320 = vsel %vm318, %v300, 0
        %321 = vrot.lane.b32.xlu0 %v240, 1
        %v322 = vpop.permute.xlu0 %321
        %323 = vrot.lane.b32.xlu0 %v239, 1
        %v324 = vpop.permute.xlu0 %323
        %vm325 = vcmask 7168
        %v326 = vsel %vm325, %v324, %v322
        %vm328 = vcmask 7168
        %v331 = vsel %vm328, %v322, %v324
        %vm333 = vmpackc.low %vm220, %vm219
        %v334 = vsel %vm333, 65537, 0
        %v335 = vlaneseq
        %v336 = vshrl.u32 %v335, 7
        %v337 = vsub.s32 0, %v336
        %v338 = vrot.slane %v334, %v337
        %v339 = vlaneseq
        %v340 = vshrl.u32 %v339, 7
        %v341 = vsub.s32 4, %v340
        %v342 = vrot.slane %v334, %v341
        %vm343 = vcmp.ne.s16.totalorder %v338, 0
        %vm344 = vcmp.ne.s16.totalorder %v342, 0
        %v345 = vsel %vm343, %v331, 0
        %v346 = vsel %vm344, %v326, 0
        %347 = vrot.lane.b32.xlu0 %v239, 127
        %v348 = vpop.permute.xlu0 %347
        %349 = vrot.lane.b32.xlu0 %v240, 127
        %v350 = vpop.permute.xlu0 %349
        %vm351 = vcmask 1039360
        %v352 = vsel %vm351, %v348, %v350
        %vm354 = vcmask 1039360
        %v357 = vsel %vm354, %v350, %v348
        %vm359 = vmpackc.low %vm222, %vm221
        %v360 = vsel %vm359, 65537, 0
        %v361 = vlaneseq
        %v362 = vshrl.u32 %v361, 7
        %v363 = vsub.s32 0, %v362
        %v364 = vrot.slane %v360, %v363
        %v365 = vlaneseq
        %v366 = vshrl.u32 %v365, 7
        %v367 = vsub.s32 4, %v366
        %v368 = vrot.slane %v360, %v367
        %vm369 = vcmp.ne.s16.totalorder %v364, 0
        %vm370 = vcmp.ne.s16.totalorder %v368, 0
        %v371 = vsel %vm369, %v352, 0
        %v372 = vsel %vm370, %v357, 0
        %373 = vrot.lane.b32.xlu0 %v239, 113
        %v374 = vpop.permute.xlu0 %373
        %375 = vrot.lane.b32.xlu0 %v240, 113
        %v376 = vpop.permute.xlu0 %375
        %vm377 = vcmask 924672
        %v378 = vsel %vm377, %v374, %v376
        %vm380 = vcmask 924672
        %v383 = vsel %vm380, %v376, %v374
        %vm385 = vmpackc.low %vm232, %vm231
        %v386 = vsel %vm385, 65537, 0
        %v387 = vlaneseq
        %v388 = vshrl.u32 %v387, 7
        %v389 = vsub.s32 0, %v388
        %v390 = vrot.slane %v386, %v389
        %v391 = vlaneseq
        %v392 = vshrl.u32 %v391, 7
        %v393 = vsub.s32 4, %v392
        %v394 = vrot.slane %v386, %v393
        %vm395 = vcmp.ne.s16.totalorder %v390, 0
        %vm396 = vcmp.ne.s16.totalorder %v394, 0
        %v397 = vsel %vm395, %v378, 0
        %v398 = vsel %vm396, %v383, 0
        %399 = vrot.lane.b32.xlu0 %v239, 112
        %v400 = vpop.permute.xlu0 %399
        %401 = vrot.lane.b32.xlu0 %v240, 112
        %v402 = vpop.permute.xlu0 %401
        %vm403 = vcmask 916480
        %v404 = vsel %vm403, %v400, %v402
        %vm406 = vcmask 916480
        %v409 = vsel %vm406, %v402, %v400
        %vm411 = vmpackc.low %vm226, %vm225
        %v412 = vsel %vm411, 65537, 0
        %v413 = vlaneseq
        %v414 = vshrl.u32 %v413, 7
        %v415 = vsub.s32 0, %v414
        %v416 = vrot.slane %v412, %v415
        %v417 = vlaneseq
        %v418 = vshrl.u32 %v417, 7
        %v419 = vsub.s32 4, %v418
        %v420 = vrot.slane %v412, %v419
        %vm421 = vcmp.ne.s16.totalorder %v416, 0
        %vm422 = vcmp.ne.s16.totalorder %v420, 0
        %v423 = vsel %vm421, %v404, 0
        %v424 = vsel %vm422, %v409, 0
        %425 = vrot.lane.b32.xlu0 %v239, 111
        %v426 = vpop.permute.xlu0 %425
        %427 = vrot.lane.b32.xlu0 %v240, 111
        %v428 = vpop.permute.xlu0 %427
        %vm429 = vcmask 908288
        %v430 = vsel %vm429, %v426, %v428
        %vm432 = vcmask 908288
        %v435 = vsel %vm432, %v428, %v426
        %vm437 = vmpackc.low %vm234, %vm233
        %v438 = vsel %vm437, 65537, 0
        %v439 = vlaneseq
        %v440 = vshrl.u32 %v439, 7
        %v441 = vsub.s32 0, %v440
        %v442 = vrot.slane %v438, %v441
        %v443 = vlaneseq
        %v444 = vshrl.u32 %v443, 7
        %v445 = vsub.s32 4, %v444
        %v446 = vrot.slane %v438, %v445
        %vm447 = vcmp.ne.s16.totalorder %v442, 0
        %vm448 = vcmp.ne.s16.totalorder %v446, 0
        %v449 = vsel %vm447, %v430, 0
        %v450 = vsel %vm448, %v435, 0
        %v453 = vrot.slane %v293, 6
        %v454 = vrot.slane %v294, 6
        %v457 = vrot.slane %v319, 4
        %v458 = vrot.slane %v320, 4
        %v461 = vrot.slane %v345, 2
        %v462 = vrot.slane %v346, 2
        %v465 = vrot.slane %v371, 6
        %v466 = vrot.slane %v372, 6
        %v469 = vrot.slane %v397, 4
        %v470 = vrot.slane %v398, 4
        %v473 = vrot.slane %v423, 2
        %v474 = vrot.slane %v424, 2
        %vm475 = vcmask 1041408
        %v478 = vsel %vm475, %v267, %v453
        %v481 = vsel %vm475, %v268, %v454
        %vm482 = vcmask 1043456
        %v484 = vsel %vm482, %v478, %v457
        %v486 = vsel %vm482, %v481, %v458
        %vm487 = vcmask 1045504
        %v489 = vsel %vm487, %v484, %v461
        %v492 = vsel %vm487, %v486, %v462
        %v496 = vsel %vm475, %v239, %v465
        %v499 = vsel %vm475, %v240, %v466
        %v501 = vsel %vm482, %v496, %v469
        %v503 = vsel %vm482, %v499, %v470
        %v505 = vsel %vm487, %v501, %v473
        %v508 = vsel %vm487, %v503, %v474
        %511 = vset.pattern.permute.xlu0 0
        %512 = vperm.xlu0 %511, %v191
        %v513 = vpop.permute.xlu0 %512
        %vm515 = vcmask 293888
        %v517 = vsel %vm515, %v190, 0
        %v520 = vsel %vm475, %v449, 0
        %v523 = vsel %vm475, %v450, 0
        %525 = vmatprep.subr.bf16.mxu0 %v492
        %526 = vmatpush1.bf16.msra.mxu0 %v489
        %527 = vmatprep.subr.bf16.mxu0 %v508
        %528 = vmatpush1.bf16.msra.mxu0 %v505
        %529 = vmatprep.subr.bf16.mxu0 %v523
        %530 = vmatpush1.bf16.msra.mxu0 %v520
        %531 = vmatprep.subr.bf16.mxu0 0
        %532 = vmatpush1.bf16.msra.mxu0 0
        %533 = vmatprep.subr.bf16.mxu0 0
        %534 = vmatpush1.bf16.msra.mxu0 0
        %535 = vmatprep.subr.bf16.mxu0 0
        %536 = vmatpush1.bf16.msra.mxu0 0
        %537 = vmatprep.subr.bf16.mxu0 0
        %538 = vmatpush1.bf16.msra.mxu0 0
        %539 = vmatprep.subr.bf16.mxu0 0
        %540 = vmatpush1.bf16.msra.mxu0 0
        %541 = vmatprep.subr.bf16.mxu0 0
        %542 = vmatpush1.bf16.msra.mxu0 0
        %543 = vmatprep.subr.bf16.mxu0 0
        %544 = vmatpush1.bf16.msra.mxu0 0
        %545 = vmatprep.subr.bf16.mxu0 0
        %546 = vmatpush1.bf16.msra.mxu0 0
        %547 = vmatprep.subr.bf16.mxu0 0
        %548 = vmatpush1.bf16.msra.mxu0 0
        %549 = vmatprep.subr.bf16.mxu0 0
        %550 = vmatpush1.bf16.msra.mxu0 0
        %551 = vmatprep.subr.bf16.mxu0 0
        %552 = vmatpush1.bf16.msra.mxu0 0
        %553 = vmatprep.subr.bf16.mxu0 0
        %554 = vmatpush1.bf16.msra.mxu0 0
        %555 = vmatprep.subr.bf16.mxu0 0
        %556 = vmatpush1.bf16.msra.mxu0 0
        %557 = vmatprep.mubr.bf16.mxu0 0
        %558 = vmatmul.mubr.bf16.gmra.mrb[0].mxu0 %v517
        %v559 = vpop.f32.mrb[0].mxu0
        %v560 = vadd.f32 %v513, %v559
        %v561 = vpop.f32.mrb[0].mxu0
        %v562 = vadd.f32 %v513, %v561
        %v563 = vpop.f32.mrb[0].mxu0
        %v564 = vpop.f32.mrb[0].mxu0
        %565 = vdwg.mxu0
        %566 = vst [vmem:[%s186] sm:$0xff] %v560
        %567 = vst [vmem:[%s186 + $0x8] sm:$0xff] %v562
        %s568 = sand.u32 %s96, 1
        %s569 = scalar_lea.sflag [#allocation4], %s568
        %s570 = sand.u32 %s96, 1
        %s571 = smul.addr %s570, 16
        %s572 = scalar_lea.vmem [#allocation5], %s571
        // Predicated region
        $region37: #{tpu_custom_call.1} parent=31 // pred_check
          %p573 = pneg %p106
        $region38: #{tpu_custom_call.1} parent=31 // pred_check_branch
          %575 = sbr.rel (%p573) target = $region40
        $region39: #{tpu_custom_call.1} parent=31 // pred_region
          %s577 = ssub.s32 256, 256
          %578 = vsyncadd %s569, %s577
          %s579 = smul.addr %s20, 2
          %s580 = smul.addr %s579, 128
          %s581 = scalar_lea.hbm %s3, %s580
          %s583 = sshll.u32 %s572, 4
          %s584 = int_to_ptr.vmem [resolvable:$true] %s583
          %586 = dma.vmem_to_hbm [thread:$0]  %s584, 256, %s581, %s569
        $region40: #{tpu_custom_call.1} parent=31 // pred_fallthru
          _
      $region32: #{tpu_custom_call.1} parent=5 // pred_fallthru
        _
      %p587 = scmp.le.s32.totalorder 2, %s15
      // Predicated region
      $region41: #{tpu_custom_call.1} parent=5 // pred_check
        %p588 = pneg %p587
      $region42: #{tpu_custom_call.1} parent=5 // pred_check_branch
        %590 = sbr.rel (%p588) target = $region44
      $region43: #{tpu_custom_call.1} parent=5 // pred_region
        %s591 = ssub.s32 %s15, 2
        // Predicated region
        $region45: #{tpu_custom_call.1} parent=43 // pred_check
          %p592 = pneg %p112
        $region46: #{tpu_custom_call.1} parent=43 // pred_check_branch
          %594 = sbr.rel (%p592) target = $region48
        $region47: #{tpu_custom_call.1} parent=43 // pred_region
          %s595 = sand.u32 %s97, 1
          %s596 = scalar_lea.sflag [#allocation4], %s595
          %s597 = sand.u32 %s97, 1
          %s598 = smul.addr %s597, 16
          %s599 = scalar_lea.vmem [#allocation5], %s598
          %600 = dma.done %s596, 256
        $region48: #{tpu_custom_call.1} parent=43 // pred_fallthru
          _
      $region44: #{tpu_custom_call.1} parent=5 // pred_fallthru
        _
    $region6: #{tpu_custom_call.1} parent=1 // loop_footer
      %s19 = sadd.s32 1, %s15
    $region7: #{tpu_custom_call.1} parent=1 // loop_footer_branch
      %14 = sbr.rel target = $region3
    $region8: #{tpu_custom_call.1} parent=1 // loop_exit
      _
    %601 = vsyncpa [#allocation3], 1
    %s602 = scalar_lea.sflag [#allocation3], 1
    %603 = vsyncpa %s602, 1
    %604 = vsyncpa [#allocation4], 1
    %s605 = scalar_lea.sflag [#allocation4], 1
    %606 = vsyncpa %s605, 1

</llo_original>
